<compile_context>
chip_gen: v7x
topology: tpu7x:2x2x1
jax: 0.10.0
libtpu: 0.0.40
codegen_flags: <defaults>
</compile_context>

<pallas_src>
import functools

import jax
import jax.numpy as jnp
from jax.experimental import pallas as pl
from jax.experimental.pallas import tpu as pltpu

LANE = 128      # lane width (last dim)
SUBLANE = 8     # sublane width (second-to-last dim)


def _round_up(n, m):
    return ((n + m - 1) // m) * m


def dqn_kernel(x_ref, w1_ref, b1_ref, w2_ref, b2_ref, o_ref):
    # Both matmuls on the MXU with f32 accumulation; bias add + ReLU on the
    # VPU in f32 (kept f32 even when MXU inputs are bf16 -> v5e-safe).
    x = x_ref[...]
    h = jnp.dot(x, w1_ref[...], preferred_element_type=jnp.float32) + b1_ref[...]
    h = jnp.maximum(h, 0.0)                       # f32 ReLU epilogue
    h = h.astype(w2_ref.dtype)                    # no-op for f32, downcast for bf16
    y = jnp.dot(h, w2_ref[...], preferred_element_type=jnp.float32) + b2_ref[...]
    o_ref[...] = y.astype(o_ref.dtype)


def prepare_dqn_params(w1, b1, w2, b2, *, compute_dtype=jnp.float32):
    """Pad parameters ONCE at init (hoisted out of the forward pass).

    w1: (in, hidden), b1: (1, hidden), w2: (hidden, out), b2: (1, out)

    Only the hidden dim is zero-padded (to a multiple of 128) so the
    intermediate activation h is lane-dense; the padding is exact
    (relu(0) = 0 and zero W2 rows contribute nothing).  The output dim is
    left unpadded to avoid HBM write amplification.  Biases stay f32
    (epilogue dtype); w1/w2 take `compute_dtype` (bf16 on v6e/v7x halves the
    dominant HBM streams while keeping f32 MXU accumulation).
    """
    hidden = w1.shape[1]
    hid_p = max(_round_up(hidden, LANE), LANE)
    w1p = jnp.pad(w1, ((0, 0), (0, hid_p - hidden))).astype(compute_dtype)
    b1p = jnp.pad(b1, ((0, 0), (0, hid_p - hidden))).astype(jnp.float32)
    w2p = jnp.pad(w2, ((0, hid_p - hidden), (0, 0))).astype(compute_dtype)
    b2p = b2.astype(jnp.float32)
    return w1p, b1p, w2p, b2p


@functools.partial(jax.jit, static_argnames=("batch_tile", "vmem_limit_bytes"))
def dqn_forward(x, w1p, b1p, w2p, b2p, *, batch_tile=None, vmem_limit_bytes=None):
    """Fused DQN forward on pre-padded params (see prepare_dqn_params).

    batch_tile=None      -> whole (sublane-padded) batch as one block, no grid.
    batch_tile=int>=512  -> batch-tiled grid for large B (weights resident,
                            "parallel" batch axis for megacore / v7x 2-TC).
    The batch pad / output slice are inside this jit, so they fuse (and are
    no-ops when B is already a multiple of 8).
    """
    B, in_size = x.shape
    hid_p = w1p.shape[1]
    out_size = w2p.shape[1]

    xc = x.astype(w1p.dtype)
    b_p = max(_round_up(B, SUBLANE), SUBLANE)

    if batch_tile is None or b_p <= batch_tile:
        # Single block: no grid, no per-step pipeline overhead.
        if b_p != B:
            xc = jnp.pad(xc, ((0, b_p - B), (0, 0)))
        out_padded = pl.pallas_call(
            dqn_kernel,
            out_shape=jax.ShapeDtypeStruct((b_p, out_size), jnp.float32),
        )(xc, w1p, b1p, w2p, b2p)
    else:
        # Large-batch path: tile the batch (>=512 rows recommended), keep
        # weights resident across the grid.  b_p > bt here, so the grid
        # always has >= 2 steps (lets v7x shard the parallel axis over 2 TCs).
        bt = batch_tile
        b_pg = _round_up(b_p, bt)
        if b_pg != B:
            xc = jnp.pad(xc, ((0, b_pg - B), (0, 0)))
        out_padded = pl.pallas_call(
            dqn_kernel,
            out_shape=jax.ShapeDtypeStruct((b_pg, out_size), jnp.float32),
            grid=(b_pg // bt,),
            in_specs=[
                pl.BlockSpec((bt, in_size), lambda i: (i, 0)),     # x tile
                pl.BlockSpec((in_size, hid_p), lambda i: (0, 0)),  # W1 (resident)
                pl.BlockSpec((1, hid_p), lambda i: (0, 0)),        # b1
                pl.BlockSpec((hid_p, out_size), lambda i: (0, 0)),  # W2 (resident)
                pl.BlockSpec((1, out_size), lambda i: (0, 0)),     # b2
            ],
            # Output block keeps the TRUE feature width (out_size): a masked
            # store, but no 32x write amplification on a mem-bound kernel.
            out_specs=pl.BlockSpec((bt, out_size), lambda i: (i, 0)),
            compiler_params=pltpu.CompilerParams(
                dimension_semantics=("parallel",),
                vmem_limit_bytes=vmem_limit_bytes,
            ),
        )(xc, w1p, b1p, w2p, b2p)

    # Slice is a no-op when B % 8 == 0; otherwise it fuses inside this jit.
    return out_padded[:B, :]


def init_linear_params(key, fan_in, fan_out):
    # Mimic torch.nn.Linear default init: U(-1/sqrt(fan_in), 1/sqrt(fan_in)).
    kw, kb = jax.random.split(key)
    bound = 1.0 / jnp.sqrt(jnp.float32(fan_in))
    # Stored as (fan_in, fan_out) == transpose of PyTorch's (out, in) layout.
    w = jax.random.uniform(kw, (fan_in, fan_out), jnp.float32, -bound, bound)
    b = jax.random.uniform(kb, (1, fan_out), jnp.float32, -bound, bound)
    return w, b


if __name__ == "__main__":
    # Small shapes consistent with DQN(input_size, hidden_size, output_size).
    batch, input_size, hidden_size, output_size = 16, 16, 32, 4

    key = jax.random.PRNGKey(0)
    k_x, k_l1, k_l2, k_big = jax.random.split(key, 4)

    x = jax.random.normal(k_x, (batch, input_size), jnp.float32)
    w1, b1 = init_linear_params(k_l1, input_size, hidden_size)
    w2, b2 = init_linear_params(k_l2, hidden_size, output_size)

    # Pure-JAX reference.
    def ref_fn(xx):
        return jnp.maximum(xx @ w1 + b1, 0.0) @ w2 + b2

    # ---- f32, single-block (deployment shape) ------------------------------
    params_f32 = prepare_dqn_params(w1, b1, w2, b2)  # padded once at init
    out = jax.block_until_ready(dqn_forward(x, *params_f32))
    ref = ref_fn(x)
    assert out.shape == (batch, output_size)
    assert jnp.allclose(out, ref, atol=1e-5, rtol=1e-5), "f32 single-block mismatch"

    # ---- f32, batch-tiled path (large batch, 512-row tiles) ----------------
    x_big = jax.random.normal(k_big, (1024, input_size), jnp.float32)
    out_big = jax.block_until_ready(
        dqn_forward(x_big, *params_f32, batch_tile=512))
    assert jnp.allclose(out_big, ref_fn(x_big), atol=1e-5, rtol=1e-5), \
        "f32 tiled mismatch"

    # ---- bf16 MXU inputs (v6e/v7x-friendly), f32 accumulate + f32 epilogue --
    params_bf16 = prepare_dqn_params(w1, b1, w2, b2, compute_dtype=jnp.bfloat16)
    out_bf16 = jax.block_until_ready(
        dqn_forward(x_big, *params_bf16, batch_tile=512))
    assert jnp.allclose(out_bf16, ref_fn(x_big), atol=5e-2, rtol=5e-2), \
        "bf16 tiled mismatch"

    # TODO(synk): DQN.save (torch.save checkpointing) is host-side I/O; no
    # Pallas equivalent.
    print("KERNEL_OK")
</pallas_src>

<mosaic_0001>
module attributes {stable_mosaic.version = 11 : i64} {
  func.func @dqn_kernel(%arg0: memref<16x16xf32, #tpu.memory_space<vmem>>, %arg1: memref<16x128xf32, #tpu.memory_space<vmem>>, %arg2: memref<1x128xf32, #tpu.memory_space<vmem>>, %arg3: memref<128x4xf32, #tpu.memory_space<vmem>>, %arg4: memref<1x4xf32, #tpu.memory_space<vmem>>, %arg5: memref<16x4xf32, #tpu.memory_space<vmem>>) attributes {dimension_semantics = [], scalar_prefetch = 0 : i64, scratch_operands = 0 : i64, tpu.core_type = #tpu.core_type<tc>} {
    %c0 = arith.constant 0 : index
    %c0_0 = arith.constant 0 : index
    %0 = vector.load %arg0[%c0, %c0_0] : memref<16x16xf32, #tpu.memory_space<vmem>>, vector<16x16xf32>
    %c0_1 = arith.constant 0 : index
    %c0_2 = arith.constant 0 : index
    %1 = vector.load %arg1[%c0_1, %c0_2] : memref<16x128xf32, #tpu.memory_space<vmem>>, vector<16x128xf32>
    %cst = arith.constant dense<0.000000e+00> : vector<16x128xf32>
    %2 = tpu.matmul %0, %1, %cst {dimension_numbers = #tpu.dot_dimension_numbers<[1], [0], [0], [1], [0, 0, 1, 1], [], []>} : vector<16x16xf32>, vector<16x128xf32>, vector<16x128xf32> -> vector<16x128xf32>
    %c0_3 = arith.constant 0 : index
    %c0_4 = arith.constant 0 : index
    %3 = vector.load %arg2[%c0_3, %c0_4] : memref<1x128xf32, #tpu.memory_space<vmem>>, vector<1x128xf32>
    %4 = vector.broadcast %3 : vector<1x128xf32> to vector<16x128xf32>
    %5 = arith.addf %2, %4 : vector<16x128xf32>
    %cst_5 = arith.constant 0.000000e+00 : f32
    %6 = vector.broadcast %cst_5 : f32 to vector<16x128xf32>
    %7 = arith.maximumf %5, %6 : vector<16x128xf32>
    %c0_6 = arith.constant 0 : index
    %c0_7 = arith.constant 0 : index
    %8 = vector.load %arg3[%c0_6, %c0_7] : memref<128x4xf32, #tpu.memory_space<vmem>>, vector<128x4xf32>
    %cst_8 = arith.constant dense<0.000000e+00> : vector<16x4xf32>
    %9 = tpu.matmul %7, %8, %cst_8 {dimension_numbers = #tpu.dot_dimension_numbers<[1], [0], [0], [1], [0, 0, 1, 1], [], []>} : vector<16x128xf32>, vector<128x4xf32>, vector<16x4xf32> -> vector<16x4xf32>
    %c0_9 = arith.constant 0 : index
    %c0_10 = arith.constant 0 : index
    %10 = vector.load %arg4[%c0_9, %c0_10] : memref<1x4xf32, #tpu.memory_space<vmem>>, vector<1x4xf32>
    %11 = vector.broadcast %10 : vector<1x4xf32> to vector<16x4xf32>
    %12 = arith.addf %9, %11 : vector<16x4xf32>
    %c0_11 = arith.constant 0 : index
    %c0_12 = arith.constant 0 : index
    %13 = vector.load %arg5[%c0_11, %c0_12] : memref<16x4xf32, #tpu.memory_space<vmem>>, vector<16x4xf32>
    tpu.vector_store %arg5[%c0_11, %c0_12], %12 {strides = array<i32>} : memref<16x4xf32, #tpu.memory_space<vmem>>, vector<16x4xf32>,
    return
  }
}

</mosaic_0001>

<llo_original>
// kernel: dqn_forward.1
$region0: #{dqn_forward.1}
  #allocation0 [shape = 'u32[]', space=smem, size = 0x4, offset = 0x4, fixed_abs, tag = 'smem constant byte address 0x4 - core index']
  #allocation1 [shape = 'u32[144,128]{1,0:T(1,128)}', space=vmem, size = 0x12000, scoped, tag = 'internal scratch']
  %s0 = inlined_call_operand.vmem [shape: f32[16,16], index: 0, kind: input, shape index: {}]
  %s1 = inlined_call_operand.vmem [shape: f32[16,128], index: 1, kind: input, shape index: {}]
  %s2 = inlined_call_operand.vmem [shape: f32[1,128], index: 2, kind: input, shape index: {}]
  %s3 = inlined_call_operand.vmem [shape: f32[128,4], index: 3, kind: input, shape index: {}]
  %s4 = inlined_call_operand.vmem [shape: f32[1,4], index: 4, kind: input, shape index: {}]
  %s5 = inlined_call_operand.vmem [shape: f32[16,4], index: 5, kind: output, shape index: {}]
  %s6 = sld [smem:[#allocation0]]
  $region30: #{dqn_forward.1} parent=0
    _
  %s8 = ssub.s32 1, %s6
  %s9 = scalar_select 0, %s8, %s6
  // Predicated region
  $region2: #{dqn_forward.1} parent=0 // pred_check
    _
  $region3: #{dqn_forward.1} parent=0 // pred_check_branch
    %11 = sbr.rel (0) target = $region5
  $region4: #{dqn_forward.1} parent=0 // pred_region
    _
  $region5: #{dqn_forward.1} parent=0 // pred_fallthru
    _
  // Predicated region
  $region6: #{dqn_forward.1} parent=0 // pred_check
    _
  $region7: #{dqn_forward.1} parent=0 // pred_check_branch
    %13 = sbr.rel (0) target = $region9
  $region8: #{dqn_forward.1} parent=0 // pred_region
    _
  $region9: #{dqn_forward.1} parent=0 // pred_fallthru
    _
  // Predicated region
  $region10: #{dqn_forward.1} parent=0 // pred_check
    _
  $region11: #{dqn_forward.1} parent=0 // pred_check_branch
    %15 = sbr.rel (0) target = $region13
  $region12: #{dqn_forward.1} parent=0 // pred_region
    _
  $region13: #{dqn_forward.1} parent=0 // pred_fallthru
    _
  // Predicated region
  $region14: #{dqn_forward.1} parent=0 // pred_check
    _
  $region15: #{dqn_forward.1} parent=0 // pred_check_branch
    %17 = sbr.rel (0) target = $region17
  $region16: #{dqn_forward.1} parent=0 // pred_region
    _
  $region17: #{dqn_forward.1} parent=0 // pred_fallthru
    _
  // Predicated region
  $region18: #{dqn_forward.1} parent=0 // pred_check
    _
  $region19: #{dqn_forward.1} parent=0 // pred_check_branch
    %19 = sbr.rel (0) target = $region21
  $region20: #{dqn_forward.1} parent=0 // pred_region
    _
  $region21: #{dqn_forward.1} parent=0 // pred_fallthru
    _
  %v20 = vld [vmem:[%s0] sm:$0xff]
  %v21 = vld [vmem:[%s0 + $0x8] sm:$0xff]
  %v22 = vld [vmem:[%s1] sm:$0xff]
  %v23 = vld [vmem:[%s1 + $0x8] sm:$0xff]
  %v24 = vld [vmem:[%s2] sm:$0x1]
  %v26 = vlaneseq
  %v27 = vshrl.u32 %v26, 7
  %v28 = vsub.s32 0, %v27
  %v29 = vrot.slane %v24, %v28
  %vm31 = vcmask 130048
  %v33 = vsel %vm31, %v20, 0
  %v36 = vsel %vm31, %v21, 0
  %38 = vmatprep.subr.mxu0 0.0
  %39 = vmatpush1.msra.mxu0 %v22
  %40 = vmatprep.subr.mxu0 0.0
  %41 = vmatpush1.msra.mxu0 %v23
  %42 = vmatprep.subr.mxu0 0.0
  %43 = vmatpush1.msra.mxu0 0.0
  %44 = vmatprep.subr.mxu0 0.0
  %45 = vmatpush1.msra.mxu0 0.0
  %46 = vmatprep.subr.mxu0 0.0
  %47 = vmatpush1.msra.mxu0 0.0
  %48 = vmatprep.subr.mxu0 0.0
  %49 = vmatpush1.msra.mxu0 0.0
  %50 = vmatprep.subr.mxu0 0.0
  %51 = vmatpush1.msra.mxu0 0.0
  %52 = vmatprep.subr.mxu0 0.0
  %53 = vmatpush1.msra.mxu0 0.0
  %54 = vmatprep.subr.mxu0 0.0
  %55 = vmatpush1.msra.mxu0 0.0
  %56 = vmatprep.subr.mxu0 0.0
  %57 = vmatpush1.msra.mxu0 0.0
  %58 = vmatprep.subr.mxu0 0.0
  %59 = vmatpush1.msra.mxu0 0.0
  %60 = vmatprep.subr.mxu0 0.0
  %61 = vmatpush1.msra.mxu0 0.0
  %62 = vmatprep.subr.mxu0 0.0
  %63 = vmatpush1.msra.mxu0 0.0
  %64 = vmatprep.subr.mxu0 0.0
  %65 = vmatpush1.msra.mxu0 0.0
  %66 = vmatprep.subr.mxu0 0.0
  %67 = vmatpush1.msra.mxu0 0.0
  %68 = vmatprep.subr.mxu0 0.0
  %69 = vmatpush1.msra.mxu0 0.0
  %70 = vmatprep.subr.mxu0 0.0
  %71 = vmatpush1.msra.mxu0 0.0
  %72 = vmatprep.subr.mxu0 0.0
  %73 = vmatpush1.msra.mxu0 0.0
  %74 = vmatprep.subr.mxu0 0.0
  %75 = vmatpush1.msra.mxu0 0.0
  %76 = vmatprep.subr.mxu0 0.0
  %77 = vmatpush1.msra.mxu0 0.0
  %78 = vmatprep.subr.mxu0 0.0
  %79 = vmatpush1.msra.mxu0 0.0
  %80 = vmatprep.subr.mxu0 0.0
  %81 = vmatpush1.msra.mxu0 0.0
  %82 = vmatprep.subr.mxu0 0.0
  %83 = vmatpush1.msra.mxu0 0.0
  %84 = vmatprep.subr.mxu0 0.0
  %85 = vmatpush1.msra.mxu0 0.0
  %86 = vmatprep.subr.mxu0 0.0
  %87 = vmatpush1.msra.mxu0 0.0
  %88 = vmatprep.subr.mxu0 0.0
  %89 = vmatpush1.msra.mxu0 0.0
  %90 = vmatprep.subr.mxu0 0.0
  %91 = vmatpush1.msra.mxu0 0.0
  %92 = vmatprep.subr.mxu0 0.0
  %93 = vmatpush1.msra.mxu0 0.0
  %94 = vmatprep.subr.mxu0 0.0
  %95 = vmatpush1.msra.mxu0 0.0
  %96 = vmatprep.subr.mxu0 0.0
  %97 = vmatpush1.msra.mxu0 0.0
  %98 = vmatprep.subr.mxu0 0.0
  %99 = vmatpush1.msra.mxu0 0.0
  %100 = vmatprep.subr.mxu0 0.0
  %101 = vmatpush1.msra.mxu0 0.0
  %102 = vmatprep.mubr.f32.mxu0 0.0
  %103 = vmatmul.mubr.f32.gmra.mrb[0].mxu0 %v33
  %v104 = vpop.f32.mrb[0].mxu0
  %v105 = vadd.f32 %v29, %v104
  %v106 = vpop.f32.mrb[0].mxu0
  %107 = vmatprep.mubr.f32.mxu0 0.0
  %108 = vmatmul.mubr.f32.gmra.mrb[0].mxu0 %v36
  %v109 = vpop.f32.mrb[0].mxu0
  %v110 = vadd.f32 %v29, %v109
  %v111 = vpop.f32.mrb[0].mxu0
  %112 = vdwg.mxu0
  %v113 = vmax.f32 %v105, 0.0
  %v114 = vmax.f32 %v110, 0.0
  %v115 = vld [vmem:[%s3] sm:$0xff]
  %v116 = vld [vmem:[%s3 + $0x8] sm:$0xff]
  %v117 = vld [vmem:[%s3 + $0x10] sm:$0xff]
  %v118 = vld [vmem:[%s3 + $0x18] sm:$0xff]
  %v119 = vld [vmem:[%s3 + $0x20] sm:$0xff]
  %v120 = vld [vmem:[%s3 + $0x28] sm:$0xff]
  %v121 = vld [vmem:[%s3 + $0x30] sm:$0xff]
  %v122 = vld [vmem:[%s3 + $0x38] sm:$0xff]
  %v123 = vld [vmem:[%s3 + $0x40] sm:$0xff]
  %v124 = vld [vmem:[%s3 + $0x48] sm:$0xff]
  %v125 = vld [vmem:[%s3 + $0x50] sm:$0xff]
  %v126 = vld [vmem:[%s3 + $0x58] sm:$0xff]
  %v127 = vld [vmem:[%s3 + $0x60] sm:$0xff]
  %v128 = vld [vmem:[%s3 + $0x68] sm:$0xff]
  %v129 = vld [vmem:[%s3 + $0x70] sm:$0xff]
  %v130 = vld [vmem:[%s3 + $0x78] sm:$0xff]
  %v131 = vld [vmem:[%s4] sm:$0x1]
  %v133 = vlaneseq
  %v134 = vshrl.u32 %v133, 7
  %v135 = vsub.s32 0, %v134
  %v136 = vrot.slane %v131, %v135
  %138 = vmatprep.subr.mxu0 0.0
  %139 = vmatpush1.msra.mxu0 %v115
  %140 = vmatprep.subr.mxu0 0.0
  %141 = vmatpush1.msra.mxu0 %v116
  %142 = vmatprep.subr.mxu0 0.0
  %143 = vmatpush1.msra.mxu0 %v117
  %144 = vmatprep.subr.mxu0 0.0
  %145 = vmatpush1.msra.mxu0 %v118
  %146 = vmatprep.subr.mxu0 0.0
  %147 = vmatpush1.msra.mxu0 %v119
  %148 = vmatprep.subr.mxu0 0.0
  %149 = vmatpush1.msra.mxu0 %v120
  %150 = vmatprep.subr.mxu0 0.0
  %151 = vmatpush1.msra.mxu0 %v121
  %152 = vmatprep.subr.mxu0 0.0
  %153 = vmatpush1.msra.mxu0 %v122
  %154 = vmatprep.subr.mxu0 0.0
  %155 = vmatpush1.msra.mxu0 %v123
  %156 = vmatprep.subr.mxu0 0.0
  %157 = vmatpush1.msra.mxu0 %v124
  %158 = vmatprep.subr.mxu0 0.0
  %159 = vmatpush1.msra.mxu0 %v125
  %160 = vmatprep.subr.mxu0 0.0
  %161 = vmatpush1.msra.mxu0 %v126
  %162 = vmatprep.subr.mxu0 0.0
  %163 = vmatpush1.msra.mxu0 %v127
  %164 = vmatprep.subr.mxu0 0.0
  %165 = vmatpush1.msra.mxu0 %v128
  %166 = vmatprep.subr.mxu0 0.0
  %167 = vmatpush1.msra.mxu0 %v129
  %168 = vmatprep.subr.mxu0 0.0
  %169 = vmatpush1.msra.mxu0 %v130
  %170 = vmatprep.subr.mxu0 0.0
  %171 = vmatpush1.msra.mxu0 0.0
  %172 = vmatprep.subr.mxu0 0.0
  %173 = vmatpush1.msra.mxu0 0.0
  %174 = vmatprep.subr.mxu0 0.0
  %175 = vmatpush1.msra.mxu0 0.0
  %176 = vmatprep.subr.mxu0 0.0
  %177 = vmatpush1.msra.mxu0 0.0
  %178 = vmatprep.subr.mxu0 0.0
  %179 = vmatpush1.msra.mxu0 0.0
  %180 = vmatprep.subr.mxu0 0.0
  %181 = vmatpush1.msra.mxu0 0.0
  %182 = vmatprep.subr.mxu0 0.0
  %183 = vmatpush1.msra.mxu0 0.0
  %184 = vmatprep.subr.mxu0 0.0
  %185 = vmatpush1.msra.mxu0 0.0
  %186 = vmatprep.subr.mxu0 0.0
  %187 = vmatpush1.msra.mxu0 0.0
  %188 = vmatprep.subr.mxu0 0.0
  %189 = vmatpush1.msra.mxu0 0.0
  %190 = vmatprep.subr.mxu0 0.0
  %191 = vmatpush1.msra.mxu0 0.0
  %192 = vmatprep.subr.mxu0 0.0
  %193 = vmatpush1.msra.mxu0 0.0
  %194 = vmatprep.subr.mxu0 0.0
  %195 = vmatpush1.msra.mxu0 0.0
  %196 = vmatprep.subr.mxu0 0.0
  %197 = vmatpush1.msra.mxu0 0.0
  %198 = vmatprep.subr.mxu0 0.0
  %199 = vmatpush1.msra.mxu0 0.0
  %200 = vmatprep.subr.mxu0 0.0
  %201 = vmatpush1.msra.mxu0 0.0
  %202 = vmatprep.mubr.f32.mxu0 0.0
  %203 = vmatmul.mubr.f32.gmra.mrb[0].mxu0 %v113
  %v204 = vpop.f32.mrb[0].mxu0
  %v205 = vadd.f32 %v136, %v204
  %v206 = vpop.f32.mrb[0].mxu0
  %207 = vmatprep.mubr.f32.mxu0 0.0
  %208 = vmatmul.mubr.f32.gmra.mrb[0].mxu0 %v114
  %v209 = vpop.f32.mrb[0].mxu0
  %v210 = vadd.f32 %v136, %v209
  %v211 = vpop.f32.mrb[0].mxu0
  %212 = vdwg.mxu0
  %vm213 = vcmask 31744
  %214 = vst.msk [vmem:[%s5] sm:$0xff] %vm213, %v205
  %215 = vst.msk [vmem:[%s5 + $0x8] sm:$0xff] %vm213, %v210
  // Predicated region
  $region22: #{dqn_forward.1} parent=0 // pred_check
    _
  $region23: #{dqn_forward.1} parent=0 // pred_check_branch
    %217 = sbr.rel (0) target = $region25
  $region24: #{dqn_forward.1} parent=0 // pred_region
    _
  $region25: #{dqn_forward.1} parent=0 // pred_fallthru
    _
  // Predicated region
  $region26: #{dqn_forward.1} parent=0 // pred_check
    _
  $region27: #{dqn_forward.1} parent=0 // pred_check_branch
    %219 = sbr.rel (0) target = $region29
  $region28: #{dqn_forward.1} parent=0 // pred_region
    _
  $region29: #{dqn_forward.1} parent=0 // pred_fallthru
    _

</llo_original>
